<compile_context>
chip_gen: v5e
topology: v5e:2x2
jax: 0.10.0
libtpu: 0.0.40
codegen_flags: <defaults>
</compile_context>

<pallas_src>
import functools
import math

import jax
import jax.numpy as jnp
from jax import lax
from jax.experimental import pallas as pl
from jax.experimental.pallas import tpu as pltpu

_LANES = 128


def _round_up(x, m):
    return ((x + m - 1) // m) * m


def _simclr_den_kernel(rows_ref, colsT_ref, out_ref, den_acc, *,
                       inv_t, n_valid, tile_r, tile_c):
    """Accumulates per-row log-denominators (stability-shifted) of NT-Xent."""
    i = pl.program_id(0)          # row-tile index  ("parallel")
    j = pl.program_id(1)          # col-tile index  ("arbitrary" reduction)
    row_lo = i * tile_r
    col_lo = j * tile_c

    @pl.when(j == 0)
    def _():
        den_acc[...] = jnp.zeros_like(den_acc)

    # rows are pre-scaled by 1/T in the wrapper, so this is sim/T directly.
    sim_t = jnp.dot(rows_ref[...], colsT_ref[...],
                    preferred_element_type=jnp.float32)            # [TR, TC]
    # Stability-shifted exponent exp(sim/T - 1/T); all valid args <= ~0.
    e = jnp.exp(sim_t - inv_t)

    # Scalar gating: interior tiles skip all mask work.
    needs_diag = jnp.logical_and(row_lo < col_lo + tile_c,
                                 col_lo < row_lo + tile_r)
    needs_pad = (col_lo + tile_c) > n_valid
    needs_mask = jnp.logical_or(needs_diag, needs_pad)

    def fold(x):
        # Lane-dense fold [TR, TC] -> [TR, 128]: pure VPU adds; the cross-lane
        # reduce is deferred to the finalize step.
        acc = x[:, 0:_LANES]
        for k in range(1, tile_c // _LANES):
            acc = acc + x[:, k * _LANES:(k + 1) * _LANES]
        return acc

    @pl.when(needs_mask)
    def _():
        rr = lax.broadcasted_iota(jnp.int32, (tile_r, 1), 0) + row_lo
        cc = lax.broadcasted_iota(jnp.int32, (1, tile_c), 1) + col_lo
        keep = jnp.logical_and(rr != cc, cc < n_valid)             # broadcast
        den_acc[...] += fold(jnp.where(keep, e, 0.0))

    @pl.when(jnp.logical_not(needs_mask))
    def _():
        den_acc[...] += fold(e)

    @pl.when(j == pl.num_programs(1) - 1)
    def _():
        den = jnp.sum(den_acc[...], axis=1, keepdims=True)          # [TR, 1]
        logd = jnp.log(den)
        row = lax.broadcasted_iota(jnp.int32, (tile_r, 1), 0) + row_lo
        logd = jnp.where(row < n_valid, logd, 0.0)                  # drop pad rows
        tile_sum = jnp.reshape(jnp.sum(logd), (1, 1))
        out_ref[...] = jnp.broadcast_to(tile_sum, (8, _LANES))


def simclr_loss(proj_1, proj_2, temperature, batch_size, *,
                tile_r=256, tile_c=512):
    """NT-Xent loss. proj_1/proj_2: [batch, embedding_dim]."""
    B, D = proj_1.shape
    assert batch_size == B, "batch_size must equal proj_1.shape[0]"
    n = 2 * B
    inv_t = 1.0 / float(temperature)
    eps = 1e-12  # matches F.normalize default

    reps = jnp.concatenate([proj_1, proj_2], axis=0).astype(jnp.float32)
    z = reps / jnp.maximum(jnp.linalg.norm(reps, axis=1, keepdims=True), eps)

    # Exact f32 positive-pair term (O(n*D)): sim(r, r±B) = <z_r, z_{r±B}>.
    pos_half = jnp.sum(z[:B] * z[B:], axis=1)                       # [B]
    pos_sum = 2.0 * jnp.sum(pos_half)

    # Tile sizing / padding: clamp tiles to the (128-aligned) problem size.
    n_pad = _round_up(n, _LANES)
    tile_c = min(tile_c, n_pad)
    tile_r = min(tile_r, n_pad)
    assert tile_r % 8 == 0 and tile_c % _LANES == 0
    n_pad = _round_up(n_pad, math.lcm(tile_r, tile_c))
    grid = (n_pad // tile_r, n_pad // tile_c)

    z_pad = jnp.pad(z, ((0, n_pad - n), (0, 0)))
    rows = (z_pad * inv_t).astype(jnp.bfloat16)                     # [n_pad, D]
    cols_t = z_pad.astype(jnp.bfloat16).T                           # [D, n_pad]

    kernel = functools.partial(
        _simclr_den_kernel,
        inv_t=inv_t, n_valid=int(n), tile_r=tile_r, tile_c=tile_c)

    out = pl.pallas_call(
        kernel,
        out_shape=jax.ShapeDtypeStruct((grid[0] * 8, _LANES), jnp.float32),
        grid=grid,
        in_specs=[
            pl.BlockSpec((tile_r, D), lambda i, j: (i, 0)),   # row tile (1/T folded)
            pl.BlockSpec((D, tile_c), lambda i, j: (0, j)),   # transposed col tile
        ],
        out_specs=pl.BlockSpec((8, _LANES), lambda i, j: (i, 0)),
        scratch_shapes=[pltpu.VMEM((tile_r, _LANES), jnp.float32)],
        compiler_params=pltpu.CompilerParams(
            dimension_semantics=("parallel", "arbitrary")),
    )(rows, cols_t)

    # Each (8,128) block holds its row-tile's sum(log den_shifted) replicated.
    sum_logden = jnp.sum(out) / (8.0 * _LANES)
    # log(den_r) = 1/T + log(den_shifted_r); loss_r = log(den_r) - pos_r/T.
    total = n * inv_t + sum_logden - inv_t * pos_sum
    return total / (2.0 * batch_size)


def _ref_loss(p1, p2, temperature):
    B = p1.shape[0]
    z_i = p1 / jnp.maximum(jnp.linalg.norm(p1, axis=1, keepdims=True), 1e-12)
    z_j = p2 / jnp.maximum(jnp.linalg.norm(p2, axis=1, keepdims=True), 1e-12)
    reps = jnp.concatenate([z_i, z_j], axis=0)
    sim = reps @ reps.T
    pos = jnp.concatenate([jnp.diagonal(sim, B), jnp.diagonal(sim, -B)])
    mask = 1.0 - jnp.eye(2 * B, dtype=jnp.float32)
    nom = jnp.exp(pos / temperature)
    den = jnp.sum(mask * jnp.exp(sim / temperature), axis=1)
    return jnp.sum(-jnp.log(nom / den)) / (2 * B)


if __name__ == "__main__":
    temperature = 0.5
    key = jax.random.PRNGKey(0)

    # Small shape (matches the module's forward: [batch, embedding_dim]).
    B, D = 8, 128
    k1, k2 = jax.random.split(key)
    proj_1 = jax.random.normal(k1, (B, D), dtype=jnp.float32)
    proj_2 = jax.random.normal(k2, (B, D), dtype=jnp.float32)
    loss = simclr_loss(proj_1, proj_2, temperature, B)
    jax.block_until_ready(loss)
    ref = _ref_loss(proj_1, proj_2, temperature)
    assert jnp.allclose(loss, ref, rtol=2e-2, atol=2e-2), (loss, ref)

    # Larger shape: exercises multi-tile grid, pl.when gating and padding.
    B2, D2 = 320, 128
    k3, k4 = jax.random.split(k2)
    p1 = jax.random.normal(k3, (B2, D2), dtype=jnp.float32)
    p2 = jax.random.normal(k4, (B2, D2), dtype=jnp.float32)
    loss2 = simclr_loss(p1, p2, temperature, B2)
    jax.block_until_ready(loss2)
    ref2 = _ref_loss(p1, p2, temperature)
    assert jnp.allclose(loss2, ref2, rtol=2e-2, atol=2e-2), (loss2, ref2)

    print("KERNEL_OK")
</pallas_src>

<mosaic_0001>
module attributes {stable_mosaic.version = 11 : i64} {
  func.func @_simclr_den_kernel(%arg0: i32, %arg1: i32, %arg2: memref<128x128xbf16, #tpu.memory_space<vmem>>, %arg3: memref<128x128xbf16, #tpu.memory_space<vmem>>, %arg4: memref<8x128xf32, #tpu.memory_space<vmem>>, %arg5: memref<128x128xf32, #tpu.memory_space<vmem>>) attributes {dimension_semantics = [#tpu.dimension_semantics<parallel>, #tpu.dimension_semantics<arbitrary>], iteration_bounds = array<i64: 1, 1>, scalar_prefetch = 0 : i64, scratch_operands = 1 : i64, tpu.core_type = #tpu.core_type<tc>, window_params = [{transform_indices = @transform_0, window_bounds = array<i64: 128, 128>}, {transform_indices = @transform_1, window_bounds = array<i64: 128, 128>}, {transform_indices = @transform_2, window_bounds = array<i64: 8, 128>}]} {
    %c128_i32 = arith.constant 128 : i32
    %0 = arith.muli %arg0, %c128_i32 : i32
    %c128_i32_0 = arith.constant 128 : i32
    %1 = arith.muli %arg1, %c128_i32_0 : i32
    %c0_i32 = arith.constant 0 : i32
    %2 = arith.cmpi eq, %arg1, %c0_i32 : i32
    %3 = arith.extui %2 : i1 to i32
    %c0_i32_1 = arith.constant 0 : i32
    %4 = arith.cmpi ne, %3, %c0_i32_1 : i32
    scf.if %4 {
      %cst_13 = arith.constant 0.000000e+00 : f32
      %27 = vector.broadcast %cst_13 : f32 to vector<128x128xf32>
      %c0_14 = arith.constant 0 : index
      %c0_15 = arith.constant 0 : index
      %28 = vector.load %arg5[%c0_14, %c0_15] : memref<128x128xf32, #tpu.memory_space<vmem>>, vector<128x128xf32>
      tpu.vector_store %arg5[%c0_14, %c0_15], %27 {strides = array<i32>} : memref<128x128xf32, #tpu.memory_space<vmem>>, vector<128x128xf32>,
    } else {
    }
    %c0 = arith.constant 0 : index
    %c0_2 = arith.constant 0 : index
    %5 = vector.load %arg2[%c0, %c0_2] : memref<128x128xbf16, #tpu.memory_space<vmem>>, vector<128x128xbf16>
    %c0_3 = arith.constant 0 : index
    %c0_4 = arith.constant 0 : index
    %6 = vector.load %arg3[%c0_3, %c0_4] : memref<128x128xbf16, #tpu.memory_space<vmem>>, vector<128x128xbf16>
    %cst = arith.constant dense<0.000000e+00> : vector<128x128xf32>
    %7 = tpu.matmul %5, %6, %cst {dimension_numbers = #tpu.dot_dimension_numbers<[1], [0], [0], [1], [0, 0, 1, 1], [], []>} : vector<128x128xbf16>, vector<128x128xbf16>, vector<128x128xf32> -> vector<128x128xf32>
    %cst_5 = arith.constant 2.000000e+00 : f32
    %8 = vector.broadcast %cst_5 : f32 to vector<128x128xf32>
    %9 = arith.subf %7, %8 : vector<128x128xf32>
    %10 = math.exp %9 : vector<128x128xf32>
    %c128_i32_6 = arith.constant 128 : i32
    %11 = arith.addi %1, %c128_i32_6 : i32
    %12 = arith.cmpi slt, %0, %11 : i32
    %c128_i32_7 = arith.constant 128 : i32
    %13 = arith.addi %0, %c128_i32_7 : i32
    %14 = arith.cmpi slt, %1, %13 : i32
    %15 = arith.andi %12, %14 : i1
    %c128_i32_8 = arith.constant 128 : i32
    %16 = arith.addi %1, %c128_i32_8 : i32
    %c16_i32 = arith.constant 16 : i32
    %17 = arith.cmpi sgt, %16, %c16_i32 : i32
    %18 = arith.ori %15, %17 : i1
    %19 = arith.extui %18 : i1 to i32
    %c0_i32_9 = arith.constant 0 : i32
    %20 = arith.cmpi ne, %19, %c0_i32_9 : i32
    scf.if %20 {
      %27 = tpu.iota {dimensions = array<i32: 0>} : vector<128x1xi32>
      %28 = vector.broadcast %0 : i32 to vector<128x1xi32>
      %29 = arith.addi %27, %28 : vector<128x1xi32>
      %30 = tpu.iota {dimensions = array<i32: 1>} : vector<1x128xi32>
      %31 = vector.broadcast %1 : i32 to vector<1x128xi32>
      %32 = arith.addi %30, %31 : vector<1x128xi32>
      %33 = vector.broadcast %29 : vector<128x1xi32> to vector<128x128xi32>
      %34 = vector.broadcast %32 : vector<1x128xi32> to vector<128x128xi32>
      %35 = arith.cmpi ne, %33, %34 : vector<128x128xi32>
      %c16_i32_13 = arith.constant 16 : i32
      %36 = vector.broadcast %c16_i32_13 : i32 to vector<1x128xi32>
      %37 = arith.cmpi slt, %32, %36 : vector<1x128xi32>
      %38 = vector.broadcast %37 : vector<1x128xi1> to vector<128x128xi1>
      %39 = arith.andi %35, %38 : vector<128x128xi1>
      %c0_14 = arith.constant 0 : index
      %c0_15 = arith.constant 0 : index
      %40 = vector.load %arg5[%c0_14, %c0_15] : memref<128x128xf32, #tpu.memory_space<vmem>>, vector<128x128xf32>
      %cst_16 = arith.constant 0.000000e+00 : f32
      %41 = vector.broadcast %cst_16 : f32 to vector<128x128xf32>
      %42 = arith.select %39, %10, %41 : vector<128x128xi1>, vector<128x128xf32>
      %43 = arith.addf %40, %42 : vector<128x128xf32>
      %c0_17 = arith.constant 0 : index
      %c0_18 = arith.constant 0 : index
      %44 = vector.load %arg5[%c0_17, %c0_18] : memref<128x128xf32, #tpu.memory_space<vmem>>, vector<128x128xf32>
      tpu.vector_store %arg5[%c0_17, %c0_18], %43 {strides = array<i32>} : memref<128x128xf32, #tpu.memory_space<vmem>>, vector<128x128xf32>,
    } else {
    }
    %true = arith.constant true
    %21 = arith.xori %18, %true : i1
    %22 = arith.extui %21 : i1 to i32
    %c0_i32_10 = arith.constant 0 : i32
    %23 = arith.cmpi ne, %22, %c0_i32_10 : i32
    scf.if %23 {
      %c0_13 = arith.constant 0 : index
      %c0_14 = arith.constant 0 : index
      %27 = vector.load %arg5[%c0_13, %c0_14] : memref<128x128xf32, #tpu.memory_space<vmem>>, vector<128x128xf32>
      %28 = arith.addf %27, %10 : vector<128x128xf32>
      %c0_15 = arith.constant 0 : index
      %c0_16 = arith.constant 0 : index
      %29 = vector.load %arg5[%c0_15, %c0_16] : memref<128x128xf32, #tpu.memory_space<vmem>>, vector<128x128xf32>
      tpu.vector_store %arg5[%c0_15, %c0_16], %28 {strides = array<i32>} : memref<128x128xf32, #tpu.memory_space<vmem>>, vector<128x128xf32>,
    } else {
    }
    %c0_i32_11 = arith.constant 0 : i32
    %24 = arith.cmpi eq, %arg1, %c0_i32_11 : i32
    %25 = arith.extui %24 : i1 to i32
    %c0_i32_12 = arith.constant 0 : i32
    %26 = arith.cmpi ne, %25, %c0_i32_12 : i32
    scf.if %26 {
      %c0_13 = arith.constant 0 : index
      %c0_14 = arith.constant 0 : index
      %27 = vector.load %arg5[%c0_13, %c0_14] : memref<128x128xf32, #tpu.memory_space<vmem>>, vector<128x128xf32>
      %cst_15 = arith.constant dense<0.000000e+00> : vector<128xf32>
      %28 = vector.multi_reduction <add>, %27, %cst_15 [1] : vector<128x128xf32> to vector<128xf32>
      %29 = vector.shape_cast %28 : vector<128xf32> to vector<128x1xf32>
      %30 = math.log %29 : vector<128x1xf32>
      %31 = tpu.iota {dimensions = array<i32: 0>} : vector<128x1xi32>
      %32 = vector.broadcast %0 : i32 to vector<128x1xi32>
      %33 = arith.addi %31, %32 : vector<128x1xi32>
      %c16_i32_16 = arith.constant 16 : i32
      %34 = vector.broadcast %c16_i32_16 : i32 to vector<128x1xi32>
      %35 = arith.cmpi slt, %33, %34 : vector<128x1xi32>
      %cst_17 = arith.constant 0.000000e+00 : f32
      %36 = vector.broadcast %cst_17 : f32 to vector<128x1xf32>
      %37 = arith.select %35, %30, %36 : vector<128x1xi1>, vector<128x1xf32>
      %38 = vector.shape_cast %37 : vector<128x1xf32> to vector<1x128x1xf32>
      %cst_18 = arith.constant dense<0.000000e+00> : vector<1xf32>
      %39 = vector.multi_reduction <add>, %38, %cst_18 [1, 2] : vector<1x128x1xf32> to vector<1xf32>
      %40 = vector.shape_cast %39 : vector<1xf32> to vector<1x1x1xf32>
      %41 = vector.extract %40[0, 0, 0] : f32 from vector<1x1x1xf32>
      %42 = vector.broadcast %41 : f32 to vector<1x1xf32>
      %43 = vector.shape_cast %42 : vector<1x1xf32> to vector<1x1xf32>
      %44 = vector.broadcast %43 : vector<1x1xf32> to vector<8x128xf32>
      %c0_19 = arith.constant 0 : index
      %c0_20 = arith.constant 0 : index
      %45 = vector.load %arg4[%c0_19, %c0_20] : memref<8x128xf32, #tpu.memory_space<vmem>>, vector<8x128xf32>
      tpu.vector_store %arg4[%c0_19, %c0_20], %44 {strides = array<i32>} : memref<8x128xf32, #tpu.memory_space<vmem>>, vector<8x128xf32>,
    } else {
    }
    return
  }
  func.func @transform_0(%arg0: i32, %arg1: i32) -> (i32, i32) {
    %c0_i32 = arith.constant 0 : i32
    %c0_i32_0 = arith.constant 0 : i32
    return %arg0, %c0_i32 : i32, i32
  }
  func.func @transform_1(%arg0: i32, %arg1: i32) -> (i32, i32) {
    %c0_i32 = arith.constant 0 : i32
    %c0_i32_0 = arith.constant 0 : i32
    return %c0_i32, %arg1 : i32, i32
  }
  func.func @transform_2(%arg0: i32, %arg1: i32) -> (i32, i32) {
    %c0_i32 = arith.constant 0 : i32
    %c0_i32_0 = arith.constant 0 : i32
    return %arg0, %c0_i32 : i32, i32
  }
}

</mosaic_0001>

<llo_original>
// kernel: tpu_custom_call.1
$region0: #{tpu_custom_call.1}
  #allocation0 [shape = 'u32[]', space=smem, size = 0x4, offset = 0x4, fixed_abs, tag = 'smem constant byte address 0x4 - core index']
  #allocation1 [shape = 'u32[72,128]{1,0:T(1,128)}', space=vmem, size = 0x9000, scoped, tag = 'internal scratch']
  #allocation2 [shape = 'f32[128,128]{1,0:T(8,128)}', space=vmem, size = 0x10000, scoped, tag = 'scratch operand']
  %s0 = inlined_call_operand.hbm [shape: bf16[128,128], index: 0, kind: input, shape index: {}]
  %s1 = inlined_call_operand.hbm [shape: bf16[128,128], index: 1, kind: input, shape index: {}]
  %s2 = inlined_call_operand.hbm [shape: f32[8,128], index: 2, kind: output, shape index: {}]
  %s3 = sld [smem:[#allocation0]]
  $region42: #{tpu_custom_call.1} parent=0
    _
  %s5 = ssub.s32 1, %s3
  %s6 = scalar_select 0, %s5, %s3
  $region1: #{tpu_custom_call.1} parent=0
    #allocation3 [shape = 'u8[32768]{0}', space=vmem, size = 0x8000, scoped, tag = 'input window, operand 0, single buffered']
    #allocation4 [shape = 's32[1]{0}', space=sflag, size = 0x4, scoped, tag = 'scoped memory for tpu_custom_call.1']
    #allocation5 [shape = 's32[1]{0}', space=sflag, size = 0x4, scoped, tag = 'scoped memory for tpu_custom_call.1']
    #allocation6 [shape = 'u8[32768]{0}', space=vmem, size = 0x8000, scoped, tag = 'input window, operand 1, single buffered']
    #allocation7 [shape = 's32[1]{0}', space=sflag, size = 0x4, scoped, tag = 'scoped memory for tpu_custom_call.1']
    #allocation8 [shape = 'u8[4096]{0}', space=vmem, size = 0x1000, scoped, tag = 'output window, operand 0, single buffered']
    %7 = vsyncpa [#allocation4], 0
    %8 = vsyncpa [#allocation7], 0
    %9 = vsyncpa [#allocation5], 0
    // Predicated region
    $region2: #{tpu_custom_call.1} parent=1 // pred_check
      _
    $region3: #{tpu_custom_call.1} parent=1 // pred_check_branch
      %11 = sbr.rel (0) target = $region5
    $region4: #{tpu_custom_call.1} parent=1 // pred_region
      %13 = vsyncadd [#allocation4], 0
      %s14 = sshll.u32 %s0, 4
      %s15 = int_to_ptr.hbm [resolvable:$true] %s14
      %s16 = sshll.u32 [#allocation3], 4
      %s17 = int_to_ptr.vmem [resolvable:$true] %s16
      %22 = dma.hbm_to_vmem [thread:$0]  %s15, 1024, %s17, [#allocation4], 64, 64, 4
    $region5: #{tpu_custom_call.1} parent=1 // pred_fallthru
      _
    // Predicated region
    $region6: #{tpu_custom_call.1} parent=1 // pred_check
      _
    $region7: #{tpu_custom_call.1} parent=1 // pred_check_branch
      %24 = sbr.rel (0) target = $region9
    $region8: #{tpu_custom_call.1} parent=1 // pred_region
      %26 = vsyncadd [#allocation7], 0
      %s27 = sshll.u32 %s1, 4
      %s28 = int_to_ptr.hbm [resolvable:$true] %s27
      %s29 = sshll.u32 [#allocation6], 4
      %s30 = int_to_ptr.vmem [resolvable:$true] %s29
      %35 = dma.hbm_to_vmem [thread:$0]  %s28, 1024, %s30, [#allocation7], 64, 64, 4
    $region9: #{tpu_custom_call.1} parent=1 // pred_fallthru
      _
    // Predicated region
    $region10: #{tpu_custom_call.1} parent=1 // pred_check
      _
    $region11: #{tpu_custom_call.1} parent=1 // pred_check_branch
      %37 = sbr.rel (0) target = $region13
    $region12: #{tpu_custom_call.1} parent=1 // pred_region
      %39 = dma.done [#allocation4], 1024
    $region13: #{tpu_custom_call.1} parent=1 // pred_fallthru
      _
    // Predicated region
    $region14: #{tpu_custom_call.1} parent=1 // pred_check
      _
    $region15: #{tpu_custom_call.1} parent=1 // pred_check_branch
      %41 = sbr.rel (0) target = $region17
    $region16: #{tpu_custom_call.1} parent=1 // pred_region
      %43 = dma.done [#allocation7], 1024
    $region17: #{tpu_custom_call.1} parent=1 // pred_fallthru
      _
    %s44 = smul.u32 0, 128
    %s45 = smul.u32 0, 128
    %p46 = scmp.eq.s32.totalorder 0, 0
    // Predicated region
    $region18: #{tpu_custom_call.1} parent=1 // pred_check
      %p47 = pneg %p46
    $region19: #{tpu_custom_call.1} parent=1 // pred_check_branch
      %49 = sbr.rel (%p47) target = $region21
    $region20: #{tpu_custom_call.1} parent=1 // pred_region
      %50 = vst [vmem:[#allocation2] sm:$0xff] 0.0
      %51 = vst [vmem:[#allocation2 + $0x8] sm:$0xff] 0.0
      %52 = vst [vmem:[#allocation2 + $0x10] sm:$0xff] 0.0
      %53 = vst [vmem:[#allocation2 + $0x18] sm:$0xff] 0.0
      %54 = vst [vmem:[#allocation2 + $0x20] sm:$0xff] 0.0
      %55 = vst [vmem:[#allocation2 + $0x28] sm:$0xff] 0.0
      %56 = vst [vmem:[#allocation2 + $0x30] sm:$0xff] 0.0
      %57 = vst [vmem:[#allocation2 + $0x38] sm:$0xff] 0.0
      %58 = vst [vmem:[#allocation2 + $0x40] sm:$0xff] 0.0
      %59 = vst [vmem:[#allocation2 + $0x48] sm:$0xff] 0.0
      %60 = vst [vmem:[#allocation2 + $0x50] sm:$0xff] 0.0
      %61 = vst [vmem:[#allocation2 + $0x58] sm:$0xff] 0.0
      %62 = vst [vmem:[#allocation2 + $0x60] sm:$0xff] 0.0
      %63 = vst [vmem:[#allocation2 + $0x68] sm:$0xff] 0.0
      %64 = vst [vmem:[#allocation2 + $0x70] sm:$0xff] 0.0
      %65 = vst [vmem:[#allocation2 + $0x78] sm:$0xff] 0.0
    $region21: #{tpu_custom_call.1} parent=1 // pred_fallthru
      _
    %v66 = vld [vmem:[#allocation3] sm:$0xf]
    %v67 = vld [vmem:[#allocation3 + $0x4] sm:$0xf]
    %v68 = vld [vmem:[#allocation3 + $0x8] sm:$0xf]
    %v69 = vld [vmem:[#allocation3 + $0xc] sm:$0xf]
    %v70 = vld [vmem:[#allocation3 + $0x10] sm:$0xf]
    %v71 = vld [vmem:[#allocation3 + $0x14] sm:$0xf]
    %v72 = vld [vmem:[#allocation3 + $0x18] sm:$0xf]
    %v73 = vld [vmem:[#allocation3 + $0x1c] sm:$0xf]
    %v74 = vld [vmem:[#allocation3 + $0x20] sm:$0xf]
    %v75 = vld [vmem:[#allocation3 + $0x24] sm:$0xf]
    %v76 = vld [vmem:[#allocation3 + $0x28] sm:$0xf]
    %v77 = vld [vmem:[#allocation3 + $0x2c] sm:$0xf]
    %v78 = vld [vmem:[#allocation3 + $0x30] sm:$0xf]
    %v79 = vld [vmem:[#allocation3 + $0x34] sm:$0xf]
    %v80 = vld [vmem:[#allocation3 + $0x38] sm:$0xf]
    %v81 = vld [vmem:[#allocation3 + $0x3c] sm:$0xf]
    %v82 = vld [vmem:[#allocation6] sm:$0xf]
    %v83 = vld [vmem:[#allocation6 + $0x4] sm:$0xf]
    %v84 = vld [vmem:[#allocation6 + $0x8] sm:$0xf]
    %v85 = vld [vmem:[#allocation6 + $0xc] sm:$0xf]
    %v86 = vld [vmem:[#allocation6 + $0x10] sm:$0xf]
    %v87 = vld [vmem:[#allocation6 + $0x14] sm:$0xf]
    %v88 = vld [vmem:[#allocation6 + $0x18] sm:$0xf]
    %v89 = vld [vmem:[#allocation6 + $0x1c] sm:$0xf]
    %v90 = vld [vmem:[#allocation6 + $0x20] sm:$0xf]
    %v91 = vld [vmem:[#allocation6 + $0x24] sm:$0xf]
    %v92 = vld [vmem:[#allocation6 + $0x28] sm:$0xf]
    %v93 = vld [vmem:[#allocation6 + $0x2c] sm:$0xf]
    %v94 = vld [vmem:[#allocation6 + $0x30] sm:$0xf]
    %v95 = vld [vmem:[#allocation6 + $0x34] sm:$0xf]
    %v96 = vld [vmem:[#allocation6 + $0x38] sm:$0xf]
    %v97 = vld [vmem:[#allocation6 + $0x3c] sm:$0xf]
    %v114 = vunpack.c.l.b16 %v66
    %v115 = vunpack.c.l.b16 %v67
    %v116 = vunpack.c.l.b16 %v68
    %v117 = vunpack.c.l.b16 %v69
    %v118 = vunpack.c.l.b16 %v70
    %v119 = vunpack.c.l.b16 %v71
    %v120 = vunpack.c.l.b16 %v72
    %v121 = vunpack.c.l.b16 %v73
    %v122 = vunpack.c.l.b16 %v74
    %v123 = vunpack.c.l.b16 %v75
    %v124 = vunpack.c.l.b16 %v76
    %v125 = vunpack.c.l.b16 %v77
    %v126 = vunpack.c.l.b16 %v78
    %v127 = vunpack.c.l.b16 %v79
    %v128 = vunpack.c.l.b16 %v80
    %v129 = vunpack.c.l.b16 %v81
    %v130 = vpack.c.b16 %v115, %v114
    %v131 = vpack.c.b16 %v117, %v116
    %v132 = vpack.c.b16 %v119, %v118
    %v133 = vpack.c.b16 %v121, %v120
    %v134 = vpack.c.b16 %v123, %v122
    %v135 = vpack.c.b16 %v125, %v124
    %v136 = vpack.c.b16 %v127, %v126
    %v137 = vpack.c.b16 %v129, %v128
    %v162 = vunpack.c.l.b16 %v82
    %v163 = vunpack.c.l.b16 %v83
    %v164 = vunpack.c.l.b16 %v84
    %v165 = vunpack.c.l.b16 %v85
    %v166 = vunpack.c.l.b16 %v86
    %v167 = vunpack.c.l.b16 %v87
    %v168 = vunpack.c.l.b16 %v88
    %v169 = vunpack.c.l.b16 %v89
    %v170 = vunpack.c.l.b16 %v90
    %v171 = vunpack.c.l.b16 %v91
    %v172 = vunpack.c.l.b16 %v92
    %v173 = vunpack.c.l.b16 %v93
    %v174 = vunpack.c.l.b16 %v94
    %v175 = vunpack.c.l.b16 %v95
    %v176 = vunpack.c.l.b16 %v96
    %v177 = vunpack.c.l.b16 %v97
    %v178 = vpack.c.b16 %v163, %v162
    %v179 = vpack.c.b16 %v165, %v164
    %v180 = vpack.c.b16 %v167, %v166
    %v181 = vpack.c.b16 %v169, %v168
    %v182 = vpack.c.b16 %v171, %v170
    %v183 = vpack.c.b16 %v173, %v172
    %v184 = vpack.c.b16 %v175, %v174
    %v185 = vpack.c.b16 %v177, %v176
    %194 = vmatpush.bf16.msra.mxu0 %v185
    %195 = vmatpush.bf16.msra.mxu0 %v184
    %196 = vmatpush.bf16.msra.mxu0 %v183
    %197 = vmatpush.bf16.msra.mxu0 %v182
    %198 = vmatpush.bf16.msra.mxu0 %v181
    %199 = vmatpush.bf16.msra.mxu0 %v180
    %200 = vmatpush.bf16.msra.mxu0 %v179
    %201 = vmatpush.bf16.msra.mxu0 %v178
    %202 = vmatmul.bf16.gmra.mxu0 %v130
    %v203 = vpop.f32.mrf.mxu0
    %v204 = vadd.f32 0.0, %v203
    %v205 = vpop.f32.mrf.mxu0
    %v206 = vadd.f32 0.0, %v205
    %207 = vmatmul.bf16.gmra.mxu0 %v131
    %v208 = vpop.f32.mrf.mxu0
    %v209 = vadd.f32 0.0, %v208
    %v210 = vpop.f32.mrf.mxu0
    %v211 = vadd.f32 0.0, %v210
    %212 = vmatmul.bf16.gmra.mxu0 %v132
    %v213 = vpop.f32.mrf.mxu0
    %v214 = vadd.f32 0.0, %v213
    %v215 = vpop.f32.mrf.mxu0
    %v216 = vadd.f32 0.0, %v215
    %217 = vmatmul.bf16.gmra.mxu0 %v133
    %v218 = vpop.f32.mrf.mxu0
    %v219 = vadd.f32 0.0, %v218
    %v220 = vpop.f32.mrf.mxu0
    %v221 = vadd.f32 0.0, %v220
    %222 = vmatmul.bf16.gmra.mxu0 %v134
    %v223 = vpop.f32.mrf.mxu0
    %v224 = vadd.f32 0.0, %v223
    %v225 = vpop.f32.mrf.mxu0
    %v226 = vadd.f32 0.0, %v225
    %227 = vmatmul.bf16.gmra.mxu0 %v135
    %v228 = vpop.f32.mrf.mxu0
    %v229 = vadd.f32 0.0, %v228
    %v230 = vpop.f32.mrf.mxu0
    %v231 = vadd.f32 0.0, %v230
    %232 = vmatmul.bf16.gmra.mxu0 %v136
    %v233 = vpop.f32.mrf.mxu0
    %v234 = vadd.f32 0.0, %v233
    %v235 = vpop.f32.mrf.mxu0
    %v236 = vadd.f32 0.0, %v235
    %237 = vmatmul.bf16.gmra.mxu0 %v137
    %v238 = vpop.f32.mrf.mxu0
    %v239 = vadd.f32 0.0, %v238
    %v240 = vpop.f32.mrf.mxu0
    %v241 = vadd.f32 0.0, %v240
    %242 = vdwg.mxu0
    %v243 = vsub.f32 %v204, 2.0
    %v244 = vsub.f32 %v206, 2.0
    %v245 = vsub.f32 %v209, 2.0
    %v246 = vsub.f32 %v211, 2.0
    %v247 = vsub.f32 %v214, 2.0
    %v248 = vsub.f32 %v216, 2.0
    %v249 = vsub.f32 %v219, 2.0
    %v250 = vsub.f32 %v221, 2.0
    %v251 = vsub.f32 %v224, 2.0
    %v252 = vsub.f32 %v226, 2.0
    %v253 = vsub.f32 %v229, 2.0
    %v254 = vsub.f32 %v231, 2.0
    %v255 = vsub.f32 %v234, 2.0
    %v256 = vsub.f32 %v236, 2.0
    %v257 = vsub.f32 %v239, 2.0
    %v258 = vsub.f32 %v241, 2.0
    %v259 = vmul.f32 %v243, 1.442695
    %v260 = vpow.pop %v259
    %v261 = vmul.f32 %v244, 1.442695
    %v262 = vpow.pop %v261
    %v263 = vmul.f32 %v245, 1.442695
    %v264 = vpow.pop %v263
    %v265 = vmul.f32 %v246, 1.442695
    %v266 = vpow.pop %v265
    %v267 = vmul.f32 %v247, 1.442695
    %v268 = vpow.pop %v267
    %v269 = vmul.f32 %v248, 1.442695
    %v270 = vpow.pop %v269
    %v271 = vmul.f32 %v249, 1.442695
    %v272 = vpow.pop %v271
    %v273 = vmul.f32 %v250, 1.442695
    %v274 = vpow.pop %v273
    %v275 = vmul.f32 %v251, 1.442695
    %v276 = vpow.pop %v275
    %v277 = vmul.f32 %v252, 1.442695
    %v278 = vpow.pop %v277
    %v279 = vmul.f32 %v253, 1.442695
    %v280 = vpow.pop %v279
    %v281 = vmul.f32 %v254, 1.442695
    %v282 = vpow.pop %v281
    %v283 = vmul.f32 %v255, 1.442695
    %v284 = vpow.pop %v283
    %v285 = vmul.f32 %v256, 1.442695
    %v286 = vpow.pop %v285
    %v287 = vmul.f32 %v257, 1.442695
    %v288 = vpow.pop %v287
    %v289 = vmul.f32 %v258, 1.442695
    %v290 = vpow.pop %v289
    %s291 = sadd.s32 %s45, 128
    %p292 = scmp.lt.s32.totalorder %s44, %s291
    %s293 = sadd.s32 %s44, 128
    %p294 = scmp.lt.s32.totalorder %s45, %s293
    %p295 = pnand %p292, %p294
    %p296 = pneg %p295
    %p297 = scmp.gt.s32.totalorder %s291, 16
    %p298 = por %p296, %p297
    // Predicated region
    $region22: #{tpu_custom_call.1} parent=1 // pred_check
      %p299 = pneg %p298
    $region23: #{tpu_custom_call.1} parent=1 // pred_check_branch
      %301 = sbr.rel (%p299) target = $region25
    $region24: #{tpu_custom_call.1} parent=1 // pred_region
      %v302 = vlaneseq
      %v303 = vshrl.u32 %v302, 7
      %v304 = vadd.s32 %v303, 8
      %v305 = vadd.s32 %v303, 16
      %v306 = vadd.s32 %v303, 24
      %v307 = vadd.s32 %v303, 32
      %v308 = vadd.s32 %v303, 40
      %v309 = vadd.s32 %v303, 48
      %v310 = vadd.s32 %v303, 56
      %v311 = vadd.s32 %v303, 64
      %v312 = vadd.s32 %v303, 72
      %v313 = vadd.s32 %v303, 80
      %v314 = vadd.s32 %v303, 88
      %v315 = vadd.s32 %v303, 96
      %v316 = vadd.s32 %v303, 104
      %v317 = vadd.s32 %v303, 112
      %v318 = vadd.s32 %v303, 120
      %v319 = vstv %s44
      %v320 = vadd.s32 %v303, %v319
      %v321 = vadd.s32 %v304, %v319
      %v322 = vadd.s32 %v305, %v319
      %v323 = vadd.s32 %v306, %v319
      %v324 = vadd.s32 %v307, %v319
      %v325 = vadd.s32 %v308, %v319
      %v326 = vadd.s32 %v309, %v319
      %v327 = vadd.s32 %v310, %v319
      %v328 = vadd.s32 %v311, %v319
      %v329 = vadd.s32 %v312, %v319
      %v330 = vadd.s32 %v313, %v319
      %v331 = vadd.s32 %v314, %v319
      %v332 = vadd.s32 %v315, %v319
      %v333 = vadd.s32 %v316, %v319
      %v334 = vadd.s32 %v317, %v319
      %v335 = vadd.s32 %v318, %v319
      %v336 = vlaneseq
      %v337 = vand.u32 %v336, 127
      %v338 = vstv %s45
      %v339 = vadd.s32 %v337, %v338
      %vm340 = vcmp.ne.s32.totalorder %v320, %v339
      %vm341 = vcmp.ne.s32.totalorder %v321, %v339
      %vm342 = vcmp.ne.s32.totalorder %v322, %v339
      %vm343 = vcmp.ne.s32.totalorder %v323, %v339
      %vm344 = vcmp.ne.s32.totalorder %v324, %v339
      %vm345 = vcmp.ne.s32.totalorder %v325, %v339
      %vm346 = vcmp.ne.s32.totalorder %v326, %v339
      %vm347 = vcmp.ne.s32.totalorder %v327, %v339
      %vm348 = vcmp.ne.s32.totalorder %v328, %v339
      %vm349 = vcmp.ne.s32.totalorder %v329, %v339
      %vm350 = vcmp.ne.s32.totalorder %v330, %v339
      %vm351 = vcmp.ne.s32.totalorder %v331, %v339
      %vm352 = vcmp.ne.s32.totalorder %v332, %v339
      %vm353 = vcmp.ne.s32.totalorder %v333, %v339
      %vm354 = vcmp.ne.s32.totalorder %v334, %v339
      %vm355 = vcmp.ne.s32.totalorder %v335, %v339
      %vm356 = vcmp.lt.s32.totalorder %v339, 16
      %v357 = vsel %vm356, 1, 0
      %vm358 = vcmp.eq.s32.totalorder %v357, 1
      %vm359 = vmand %vm340, %vm358
      %vm360 = vmand %vm341, %vm358
      %vm361 = vmand %vm342, %vm358
      %vm362 = vmand %vm343, %vm358
      %vm363 = vmand %vm344, %vm358
      %vm364 = vmand %vm345, %vm358
      %vm365 = vmand %vm346, %vm358
      %vm366 = vmand %vm347, %vm358
      %vm367 = vmand %vm348, %vm358
      %vm368 = vmand %vm349, %vm358
      %vm369 = vmand %vm350, %vm358
      %vm370 = vmand %vm351, %vm358
      %vm371 = vmand %vm352, %vm358
      %vm372 = vmand %vm353, %vm358
      %vm373 = vmand %vm354, %vm358
      %vm374 = vmand %vm355, %vm358
      %v375 = vld [vmem:[#allocation2] sm:$0xff]
      %v376 = vld [vmem:[#allocation2 + $0x8] sm:$0xff]
      %v377 = vld [vmem:[#allocation2 + $0x10] sm:$0xff]
      %v378 = vld [vmem:[#allocation2 + $0x18] sm:$0xff]
      %v379 = vld [vmem:[#allocation2 + $0x20] sm:$0xff]
      %v380 = vld [vmem:[#allocation2 + $0x28] sm:$0xff]
      %v381 = vld [vmem:[#allocation2 + $0x30] sm:$0xff]
      %v382 = vld [vmem:[#allocation2 + $0x38] sm:$0xff]
      %v383 = vld [vmem:[#allocation2 + $0x40] sm:$0xff]
      %v384 = vld [vmem:[#allocation2 + $0x48] sm:$0xff]
      %v385 = vld [vmem:[#allocation2 + $0x50] sm:$0xff]
      %v386 = vld [vmem:[#allocation2 + $0x58] sm:$0xff]
      %v387 = vld [vmem:[#allocation2 + $0x60] sm:$0xff]
      %v388 = vld [vmem:[#allocation2 + $0x68] sm:$0xff]
      %v389 = vld [vmem:[#allocation2 + $0x70] sm:$0xff]
      %v390 = vld [vmem:[#allocation2 + $0x78] sm:$0xff]
      %v391 = vsel %vm359, %v260, 0.0
      %v392 = vsel %vm360, %v262, 0.0
      %v393 = vsel %vm361, %v264, 0.0
      %v394 = vsel %vm362, %v266, 0.0
      %v395 = vsel %vm363, %v268, 0.0
      %v396 = vsel %vm364, %v270, 0.0
      %v397 = vsel %vm365, %v272, 0.0
      %v398 = vsel %vm366, %v274, 0.0
      %v399 = vsel %vm367, %v276, 0.0
      %v400 = vsel %vm368, %v278, 0.0
      %v401 = vsel %vm369, %v280, 0.0
      %v402 = vsel %vm370, %v282, 0.0
      %v403 = vsel %vm371, %v284, 0.0
      %v404 = vsel %vm372, %v286, 0.0
      %v405 = vsel %vm373, %v288, 0.0
      %v406 = vsel %vm374, %v290, 0.0
      %v407 = vadd.f32 %v375, %v391
      %v408 = vadd.f32 %v376, %v392
      %v409 = vadd.f32 %v377, %v393
      %v410 = vadd.f32 %v378, %v394
      %v411 = vadd.f32 %v379, %v395
      %v412 = vadd.f32 %v380, %v396
      %v413 = vadd.f32 %v381, %v397
      %v414 = vadd.f32 %v382, %v398
      %v415 = vadd.f32 %v383, %v399
      %v416 = vadd.f32 %v384, %v400
      %v417 = vadd.f32 %v385, %v401
      %v418 = vadd.f32 %v386, %v402
      %v419 = vadd.f32 %v387, %v403
      %v420 = vadd.f32 %v388, %v404
      %v421 = vadd.f32 %v389, %v405
      %v422 = vadd.f32 %v390, %v406
      %423 = vst [vmem:[#allocation2] sm:$0xff] %v407
      %424 = vst [vmem:[#allocation2 + $0x8] sm:$0xff] %v408
      %425 = vst [vmem:[#allocation2 + $0x10] sm:$0xff] %v409
      %426 = vst [vmem:[#allocation2 + $0x18] sm:$0xff] %v410
      %427 = vst [vmem:[#allocation2 + $0x20] sm:$0xff] %v411
      %428 = vst [vmem:[#allocation2 + $0x28] sm:$0xff] %v412
      %429 = vst [vmem:[#allocation2 + $0x30] sm:$0xff] %v413
      %430 = vst [vmem:[#allocation2 + $0x38] sm:$0xff] %v414
      %431 = vst [vmem:[#allocation2 + $0x40] sm:$0xff] %v415
      %432 = vst [vmem:[#allocation2 + $0x48] sm:$0xff] %v416
      %433 = vst [vmem:[#allocation2 + $0x50] sm:$0xff] %v417
      %434 = vst [vmem:[#allocation2 + $0x58] sm:$0xff] %v418
      %435 = vst [vmem:[#allocation2 + $0x60] sm:$0xff] %v419
      %436 = vst [vmem:[#allocation2 + $0x68] sm:$0xff] %v420
      %437 = vst [vmem:[#allocation2 + $0x70] sm:$0xff] %v421
      %438 = vst [vmem:[#allocation2 + $0x78] sm:$0xff] %v422
    $region25: #{tpu_custom_call.1} parent=1 // pred_fallthru
      _
    %p439 = pneg %p298
    // Predicated region
    $region26: #{tpu_custom_call.1} parent=1 // pred_check
      _
    $region27: #{tpu_custom_call.1} parent=1 // pred_check_branch
      %441 = sbr.rel (%p298) target = $region29
    $region28: #{tpu_custom_call.1} parent=1 // pred_region
      %v442 = vld [vmem:[#allocation2] sm:$0xff]
      %v443 = vld [vmem:[#allocation2 + $0x8] sm:$0xff]
      %v444 = vld [vmem:[#allocation2 + $0x10] sm:$0xff]
      %v445 = vld [vmem:[#allocation2 + $0x18] sm:$0xff]
      %v446 = vld [vmem:[#allocation2 + $0x20] sm:$0xff]
      %v447 = vld [vmem:[#allocation2 + $0x28] sm:$0xff]
      %v448 = vld [vmem:[#allocation2 + $0x30] sm:$0xff]
      %v449 = vld [vmem:[#allocation2 + $0x38] sm:$0xff]
      %v450 = vld [vmem:[#allocation2 + $0x40] sm:$0xff]
      %v451 = vld [vmem:[#allocation2 + $0x48] sm:$0xff]
      %v452 = vld [vmem:[#allocation2 + $0x50] sm:$0xff]
      %v453 = vld [vmem:[#allocation2 + $0x58] sm:$0xff]
      %v454 = vld [vmem:[#allocation2 + $0x60] sm:$0xff]
      %v455 = vld [vmem:[#allocation2 + $0x68] sm:$0xff]
      %v456 = vld [vmem:[#allocation2 + $0x70] sm:$0xff]
      %v457 = vld [vmem:[#allocation2 + $0x78] sm:$0xff]
      %v458 = vadd.f32 %v442, %v260
      %v459 = vadd.f32 %v443, %v262
      %v460 = vadd.f32 %v444, %v264
      %v461 = vadd.f32 %v445, %v266
      %v462 = vadd.f32 %v446, %v268
      %v463 = vadd.f32 %v447, %v270
      %v464 = vadd.f32 %v448, %v272
      %v465 = vadd.f32 %v449, %v274
      %v466 = vadd.f32 %v450, %v276
      %v467 = vadd.f32 %v451, %v278
      %v468 = vadd.f32 %v452, %v280
      %v469 = vadd.f32 %v453, %v282
      %v470 = vadd.f32 %v454, %v284
      %v471 = vadd.f32 %v455, %v286
      %v472 = vadd.f32 %v456, %v288
      %v473 = vadd.f32 %v457, %v290
      %474 = vst [vmem:[#allocation2] sm:$0xff] %v458
      %475 = vst [vmem:[#allocation2 + $0x8] sm:$0xff] %v459
      %476 = vst [vmem:[#allocation2 + $0x10] sm:$0xff] %v460
      %477 = vst [vmem:[#allocation2 + $0x18] sm:$0xff] %v461
      %478 = vst [vmem:[#allocation2 + $0x20] sm:$0xff] %v462
      %479 = vst [vmem:[#allocation2 + $0x28] sm:$0xff] %v463
      %480 = vst [vmem:[#allocation2 + $0x30] sm:$0xff] %v464
      %481 = vst [vmem:[#allocation2 + $0x38] sm:$0xff] %v465
      %482 = vst [vmem:[#allocation2 + $0x40] sm:$0xff] %v466
      %483 = vst [vmem:[#allocation2 + $0x48] sm:$0xff] %v467
      %484 = vst [vmem:[#allocation2 + $0x50] sm:$0xff] %v468
      %485 = vst [vmem:[#allocation2 + $0x58] sm:$0xff] %v469
      %486 = vst [vmem:[#allocation2 + $0x60] sm:$0xff] %v470
      %487 = vst [vmem:[#allocation2 + $0x68] sm:$0xff] %v471
      %488 = vst [vmem:[#allocation2 + $0x70] sm:$0xff] %v472
      %489 = vst [vmem:[#allocation2 + $0x78] sm:$0xff] %v473
    $region29: #{tpu_custom_call.1} parent=1 // pred_fallthru
      _
    // Predicated region
    $region30: #{tpu_custom_call.1} parent=1 // pred_check
      %p490 = pneg %p46
    $region31: #{tpu_custom_call.1} parent=1 // pred_check_branch
      %492 = sbr.rel (%p490) target = $region33
    $region32: #{tpu_custom_call.1} parent=1 // pred_region
      %v493 = vld [vmem:[#allocation2] sm:$0xff]
      %v494 = vld [vmem:[#allocation2 + $0x8] sm:$0xff]
      %v495 = vld [vmem:[#allocation2 + $0x10] sm:$0xff]
      %v496 = vld [vmem:[#allocation2 + $0x18] sm:$0xff]
      %v497 = vld [vmem:[#allocation2 + $0x20] sm:$0xff]
      %v498 = vld [vmem:[#allocation2 + $0x28] sm:$0xff]
      %v499 = vld [vmem:[#allocation2 + $0x30] sm:$0xff]
      %v500 = vld [vmem:[#allocation2 + $0x38] sm:$0xff]
      %v501 = vld [vmem:[#allocation2 + $0x40] sm:$0xff]
      %v502 = vld [vmem:[#allocation2 + $0x48] sm:$0xff]
      %v503 = vld [vmem:[#allocation2 + $0x50] sm:$0xff]
      %v504 = vld [vmem:[#allocation2 + $0x58] sm:$0xff]
      %v505 = vld [vmem:[#allocation2 + $0x60] sm:$0xff]
      %v506 = vld [vmem:[#allocation2 + $0x68] sm:$0xff]
      %v507 = vld [vmem:[#allocation2 + $0x70] sm:$0xff]
      %v508 = vld [vmem:[#allocation2 + $0x78] sm:$0xff]
      %509 = vadd.xlane.f32.xlu0 %v493
      %v510 = vpop.xlane.xlu0 %509
      %511 = vadd.xlane.f32.xlu0 %v494
      %v512 = vpop.xlane.xlu0 %511
      %513 = vadd.xlane.f32.xlu0 %v495
      %v514 = vpop.xlane.xlu0 %513
      %515 = vadd.xlane.f32.xlu0 %v496
      %v516 = vpop.xlane.xlu0 %515
      %517 = vadd.xlane.f32.xlu0 %v497
      %v518 = vpop.xlane.xlu0 %517
      %519 = vadd.xlane.f32.xlu0 %v498
      %v520 = vpop.xlane.xlu0 %519
      %521 = vadd.xlane.f32.xlu0 %v499
      %v522 = vpop.xlane.xlu0 %521
      %523 = vadd.xlane.f32.xlu0 %v500
      %v524 = vpop.xlane.xlu0 %523
      %525 = vadd.xlane.f32.xlu0 %v501
      %v526 = vpop.xlane.xlu0 %525
      %527 = vadd.xlane.f32.xlu0 %v502
      %v528 = vpop.xlane.xlu0 %527
      %529 = vadd.xlane.f32.xlu0 %v503
      %v530 = vpop.xlane.xlu0 %529
      %531 = vadd.xlane.f32.xlu0 %v504
      %v532 = vpop.xlane.xlu0 %531
      %533 = vadd.xlane.f32.xlu0 %v505
      %v534 = vpop.xlane.xlu0 %533
      %535 = vadd.xlane.f32.xlu0 %v506
      %v536 = vpop.xlane.xlu0 %535
      %537 = vadd.xlane.f32.xlu0 %v507
      %v538 = vpop.xlane.xlu0 %537
      %539 = vadd.xlane.f32.xlu0 %v508
      %v540 = vpop.xlane.xlu0 %539
      %v541 = vlog2.pop %v510
      %v542 = vmul.f32 %v541, 0.6931472
      %v543 = vlog2.pop %v512
      %v544 = vmul.f32 %v543, 0.6931472
      %v545 = vlog2.pop %v514
      %v546 = vmul.f32 %v545, 0.6931472
      %v547 = vlog2.pop %v516
      %v548 = vmul.f32 %v547, 0.6931472
      %v549 = vlog2.pop %v518
      %v550 = vmul.f32 %v549, 0.6931472
      %v551 = vlog2.pop %v520
      %v552 = vmul.f32 %v551, 0.6931472
      %v553 = vlog2.pop %v522
      %v554 = vmul.f32 %v553, 0.6931472
      %v555 = vlog2.pop %v524
      %v556 = vmul.f32 %v555, 0.6931472
      %v557 = vlog2.pop %v526
      %v558 = vmul.f32 %v557, 0.6931472
      %v559 = vlog2.pop %v528
      %v560 = vmul.f32 %v559, 0.6931472
      %v561 = vlog2.pop %v530
      %v562 = vmul.f32 %v561, 0.6931472
      %v563 = vlog2.pop %v532
      %v564 = vmul.f32 %v563, 0.6931472
      %v565 = vlog2.pop %v534
      %v566 = vmul.f32 %v565, 0.6931472
      %v567 = vlog2.pop %v536
      %v568 = vmul.f32 %v567, 0.6931472
      %v569 = vlog2.pop %v538
      %v570 = vmul.f32 %v569, 0.6931472
      %v571 = vlog2.pop %v540
      %v572 = vmul.f32 %v571, 0.6931472
      %v573 = vlaneseq
      %v574 = vshrl.u32 %v573, 7
      %v575 = vadd.s32 %v574, 8
      %v576 = vadd.s32 %v574, 16
      %v577 = vadd.s32 %v574, 24
      %v578 = vadd.s32 %v574, 32
      %v579 = vadd.s32 %v574, 40
      %v580 = vadd.s32 %v574, 48
      %v581 = vadd.s32 %v574, 56
      %v582 = vadd.s32 %v574, 64
      %v583 = vadd.s32 %v574, 72
      %v584 = vadd.s32 %v574, 80
      %v585 = vadd.s32 %v574, 88
      %v586 = vadd.s32 %v574, 96
      %v587 = vadd.s32 %v574, 104
      %v588 = vadd.s32 %v574, 112
      %v589 = vadd.s32 %v574, 120
      %v590 = vstv %s44
      %v591 = vadd.s32 %v574, %v590
      %v592 = vadd.s32 %v575, %v590
      %v593 = vadd.s32 %v576, %v590
      %v594 = vadd.s32 %v577, %v590
      %v595 = vadd.s32 %v578, %v590
      %v596 = vadd.s32 %v579, %v590
      %v597 = vadd.s32 %v580, %v590
      %v598 = vadd.s32 %v581, %v590
      %v599 = vadd.s32 %v582, %v590
      %v600 = vadd.s32 %v583, %v590
      %v601 = vadd.s32 %v584, %v590
      %v602 = vadd.s32 %v585, %v590
      %v603 = vadd.s32 %v586, %v590
      %v604 = vadd.s32 %v587, %v590
      %v605 = vadd.s32 %v588, %v590
      %v606 = vadd.s32 %v589, %v590
      %vm607 = vcmp.lt.s32.totalorder %v591, 16
      %vm608 = vcmp.lt.s32.totalorder %v592, 16
      %vm609 = vcmp.lt.s32.totalorder %v593, 16
      %vm610 = vcmp.lt.s32.totalorder %v594, 16
      %vm611 = vcmp.lt.s32.totalorder %v595, 16
      %vm612 = vcmp.lt.s32.totalorder %v596, 16
      %vm613 = vcmp.lt.s32.totalorder %v597, 16
      %vm614 = vcmp.lt.s32.totalorder %v598, 16
      %vm615 = vcmp.lt.s32.totalorder %v599, 16
      %vm616 = vcmp.lt.s32.totalorder %v600, 16
      %vm617 = vcmp.lt.s32.totalorder %v601, 16
      %vm618 = vcmp.lt.s32.totalorder %v602, 16
      %vm619 = vcmp.lt.s32.totalorder %v603, 16
      %vm620 = vcmp.lt.s32.totalorder %v604, 16
      %vm621 = vcmp.lt.s32.totalorder %v605, 16
      %vm622 = vcmp.lt.s32.totalorder %v606, 16
      %v623 = vsel %vm607, %v542, 0.0
      %v624 = vsel %vm608, %v544, 0.0
      %v625 = vsel %vm609, %v546, 0.0
      %v626 = vsel %vm610, %v548, 0.0
      %v627 = vsel %vm611, %v550, 0.0
      %v628 = vsel %vm612, %v552, 0.0
      %v629 = vsel %vm613, %v554, 0.0
      %v630 = vsel %vm614, %v556, 0.0
      %v631 = vsel %vm615, %v558, 0.0
      %v632 = vsel %vm616, %v560, 0.0
      %v633 = vsel %vm617, %v562, 0.0
      %v634 = vsel %vm618, %v564, 0.0
      %v635 = vsel %vm619, %v566, 0.0
      %v636 = vsel %vm620, %v568, 0.0
      %v637 = vsel %vm621, %v570, 0.0
      %v638 = vsel %vm622, %v572, 0.0
      %vm639 = vcmask 7168
      %v640 = vsel %vm639, %v623, 0.0
      %v641 = vsel %vm639, %v624, 0.0
      %v642 = vadd.f32 %v640, %v641
      %v643 = vsel %vm639, %v625, 0.0
      %v644 = vadd.f32 %v642, %v643
      %v645 = vsel %vm639, %v626, 0.0
      %v646 = vadd.f32 %v644, %v645
      %v647 = vsel %vm639, %v627, 0.0
      %v648 = vadd.f32 %v646, %v647
      %v649 = vsel %vm639, %v628, 0.0
      %v650 = vadd.f32 %v648, %v649
      %v651 = vsel %vm639, %v629, 0.0
      %v652 = vadd.f32 %v650, %v651
      %v653 = vsel %vm639, %v630, 0.0
      %v654 = vadd.f32 %v652, %v653
      %v655 = vsel %vm639, %v631, 0.0
      %v656 = vadd.f32 %v654, %v655
      %v657 = vsel %vm639, %v632, 0.0
      %v658 = vadd.f32 %v656, %v657
      %v659 = vsel %vm639, %v633, 0.0
      %v660 = vadd.f32 %v658, %v659
      %v661 = vsel %vm639, %v634, 0.0
      %v662 = vadd.f32 %v660, %v661
      %v663 = vsel %vm639, %v635, 0.0
      %v664 = vadd.f32 %v662, %v663
      %v665 = vsel %vm639, %v636, 0.0
      %v666 = vadd.f32 %v664, %v665
      %v667 = vsel %vm639, %v637, 0.0
      %v668 = vadd.f32 %v666, %v667
      %v669 = vsel %vm639, %v638, 0.0
      %v670 = vadd.f32 %v668, %v669
      %671 = vadd.xlane.f32.xlu0 %v670
      %v672 = vpop.xlane.xlu0 %671
      %v673 = vrot.slane %v672, 4
      %v674 = vadd.f32 %v672, %v673
      %v675 = vrot.slane %v674, 2
      %v676 = vadd.f32 %v674, %v675
      %v677 = vrot.slane %v676, 1
      %v678 = vadd.f32 %v676, %v677
      %s679 = vtos %v678
      %v680 = vstv %s679
      %681 = vst [vmem:[#allocation8] sm:$0xff] %v680
    $region33: #{tpu_custom_call.1} parent=1 // pred_fallthru
      _
    // Predicated region
    $region34: #{tpu_custom_call.1} parent=1 // pred_check
      _
    $region35: #{tpu_custom_call.1} parent=1 // pred_check_branch
      %683 = sbr.rel (0) target = $region37
    $region36: #{tpu_custom_call.1} parent=1 // pred_region
      %685 = vsyncadd [#allocation5], 0
      %s687 = sshll.u32 [#allocation8], 4
      %s688 = int_to_ptr.vmem [resolvable:$true] %s687
      %s689 = sshll.u32 %s2, 4
      %s690 = int_to_ptr.hbm [resolvable:$true] %s689
      %692 = dma.vmem_to_hbm [thread:$0]  %s688, 128, %s690, [#allocation5]
    $region37: #{tpu_custom_call.1} parent=1 // pred_fallthru
      _
    // Predicated region
    $region38: #{tpu_custom_call.1} parent=1 // pred_check
      _
    $region39: #{tpu_custom_call.1} parent=1 // pred_check_branch
      %694 = sbr.rel (0) target = $region41
    $region40: #{tpu_custom_call.1} parent=1 // pred_region
      %696 = dma.done [#allocation5], 128
    $region41: #{tpu_custom_call.1} parent=1 // pred_fallthru
      _
    %697 = vsyncpa [#allocation4], 1
    %698 = vsyncpa [#allocation7], 1
    %699 = vsyncpa [#allocation5], 1

</llo_original>
